<compile_context>
chip_gen: v6e
topology: v6e:2x2x1
jax: 0.10.0
libtpu: 0.0.40
codegen_flags: <defaults>
</compile_context>

<pallas_src>
import numpy as np
import jax
import jax.numpy as jnp
from jax.experimental import pallas as pl
from jax.experimental.pallas import tpu as pltpu

_EPS = 1e-5          # nn.BatchNorm2d default eps
_LANE = 128          # TPU lane width

# Shared compiler params: megacore-parallel grid axis (no-op on v5e/v6e),
# explicit VMEM budget that also fits v7x's 64 MiB physical VMEM.
_CPARAMS = pltpu.CompilerParams(
    dimension_semantics=("parallel",),
    vmem_limit_bytes=32 * 1024 * 1024,
)


# ---------------------------------------------------------------- helpers ----

def _rup(x, m):
    return (x + m - 1) // m * m


def _pad_last(a, *targets):
    """Zero-pad the trailing len(targets) dims of `a` up to `targets`."""
    k = len(targets)
    pads = [(0, 0)] * (a.ndim - k) + [
        (0, t - d) for d, t in zip(a.shape[a.ndim - k:], targets)]
    if all(p == (0, 0) for p in pads):
        return a
    return jnp.pad(a, pads)


def _row_tile(total, max_rows=1024):
    """Largest divisor of `total` that is <= max_rows and a multiple of 8."""
    for t in range(min(total, max_rows), 0, -1):
        if total % t == 0 and t % 8 == 0:
            return t
    return total


def _bn_fold(stats, count, gamma_p, beta_p):
    """Fold per-tile (sum, sumsq) partials into per-channel scale/shift.

    (1, C)-sized parameter math only -> plain JAX glue.
    """
    st = stats.reshape(-1, 8, stats.shape[-1])
    ssum = jnp.sum(st[:, 0, :], axis=0)
    ssq = jnp.sum(st[:, 1, :], axis=0)
    mean = ssum / float(count)
    var = jnp.maximum(ssq / float(count) - mean * mean, 0.0)
    scale = gamma_p * jax.lax.rsqrt(var + _EPS)
    shift = beta_p - mean * scale
    return scale.astype(jnp.float32), shift.astype(jnp.float32)


# ---------------------------------------------------------------- kernels ----

def _conv1x1_stats_kernel(x_ref, w_ref, y_ref, st_ref):
    """1x1 conv (row-tiled matmul) + per-tile BN sum / sumsq partials."""
    y = jnp.dot(x_ref[...].astype(jnp.bfloat16), w_ref[...],
                preferred_element_type=jnp.float32)
    y_ref[...] = y.astype(y_ref.dtype)
    st_ref[...] = jnp.zeros_like(st_ref)
    st_ref[0:1, :] = jnp.sum(y, axis=0, keepdims=True)
    st_ref[1:2, :] = jnp.sum(y * y, axis=0, keepdims=True)


def _make_conv3x3_kernel(H, W, C):
    """bn1(scale/shift)+relu fused with 3x3 conv = 9 shifted bf16 matmuls."""
    HW = H * W
    MARGIN = W + 1  # covers the largest flattened shift |dy*W + dx| = W + 1

    def kernel(y1_ref, sc_ref, sh_ref, w2_ref, y2_ref, st_ref, hbuf_ref):
        # Folded bn1 + relu (one multiply-add), stage into zero-margined buffer.
        h1 = jnp.maximum(
            y1_ref[...].astype(jnp.float32) * sc_ref[...] + sh_ref[...], 0.0)
        zeros_m = jnp.zeros((MARGIN, C), jnp.float32)
        hbuf_ref[0:MARGIN, :] = zeros_m
        hbuf_ref[MARGIN + HW:MARGIN + HW + MARGIN, :] = zeros_m
        hbuf_ref[MARGIN:MARGIN + HW, :] = h1

        # Masks that zero taps which wrapped across the left/right image edge.
        col = jax.lax.broadcasted_iota(jnp.int32, (HW, 1), 0) % W
        not_left = col != 0
        not_right = col != (W - 1)

        # 3x3 conv as 9 shifted matmuls, accumulated in a local f32 value so
        # the output block is stored exactly once.
        acc = None
        for k in range(9):
            dy, dx = k // 3 - 1, k % 3 - 1
            start = MARGIN + dy * W + dx
            tap = hbuf_ref[start:start + HW, :]
            if dx == -1:
                tap = jnp.where(not_left, tap, 0.0)
            elif dx == 1:
                tap = jnp.where(not_right, tap, 0.0)
            contrib = jnp.dot(tap.astype(jnp.bfloat16), w2_ref[k],
                              preferred_element_type=jnp.float32)
            acc = contrib if acc is None else acc + contrib

        y2_ref[...] = acc.astype(y2_ref.dtype)
        st_ref[...] = jnp.zeros_like(st_ref)
        st_ref[0:1, :] = jnp.sum(acc, axis=0, keepdims=True)
        st_ref[1:2, :] = jnp.sum(acc * acc, axis=0, keepdims=True)

    return kernel


def _make_pool_proj_kernel(s, Ho, Wo, Cm, Cx, has_ds):
    """bn2+relu -> avgpool(s) -> conv3 (1x1); optional avgpool(x) -> conv_ds.

    Inputs are viewed as (Ho, s, Wo, s*C) blocks so pooling is a sum of s*s
    lane-aligned slices (no strided/relayout ops). The bn2 scale/shift arrive
    pre-tiled to (1, s*C) so bn2+relu is one pass over the whole block.
    """
    HWo = Ho * Wo
    inv = 1.0 / float(s * s)

    def kernel(*refs):
        it = iter(refs)
        y2_ref = next(it)
        sc_ref = next(it)
        sh_ref = next(it)
        x_ref = next(it) if has_ds else None
        w3_ref = next(it)
        wd_ref = next(it) if has_ds else None
        y3_ref = next(it)
        yd_ref = next(it) if has_ds else None
        st3_ref = next(it)
        std_ref = next(it) if has_ds else None

        # ---- main branch: bn2 + relu (folded, single pass), then pool -------
        h = jnp.maximum(
            y2_ref[...].astype(jnp.float32) * sc_ref[...] + sh_ref[...], 0.0)
        acc = None
        for dy in range(s):
            for dx in range(s):
                v = h[:, dy, :, dx * Cm:(dx + 1) * Cm]      # (Ho, Wo, Cm)
                acc = v if acc is None else acc + v
        ph = acc if s == 1 else acc * inv
        ph = ph.reshape(HWo, Cm).astype(jnp.bfloat16)
        y3 = jnp.dot(ph, w3_ref[...], preferred_element_type=jnp.float32)
        y3_ref[...] = y3.astype(y3_ref.dtype)
        st3_ref[...] = jnp.zeros_like(st3_ref)
        st3_ref[0:1, :] = jnp.sum(y3, axis=0, keepdims=True)
        st3_ref[1:2, :] = jnp.sum(y3 * y3, axis=0, keepdims=True)

        # ---- identity branch: avgpool(x) -> 1x1 downsample conv -------------
        if has_ds:
            xr = x_ref[...]
            xacc = None
            for dy in range(s):
                for dx in range(s):
                    v = xr[:, dy, :, dx * Cx:(dx + 1) * Cx]
                    xacc = v if xacc is None else xacc + v
            px = xacc if s == 1 else xacc * inv
            px = px.reshape(HWo, Cx).astype(jnp.bfloat16)
            yd = jnp.dot(px, wd_ref[...], preferred_element_type=jnp.float32)
            yd_ref[...] = yd.astype(yd_ref.dtype)
            std_ref[...] = jnp.zeros_like(std_ref)
            std_ref[0:1, :] = jnp.sum(yd, axis=0, keepdims=True)
            std_ref[1:2, :] = jnp.sum(yd * yd, axis=0, keepdims=True)

    return kernel


def _residual_ds_kernel(y3_ref, yd_ref, sc3_ref, sh3_ref, scd_ref, shd_ref, o_ref):
    main = y3_ref[...].astype(jnp.float32) * sc3_ref[...] + sh3_ref[...]
    ident = yd_ref[...].astype(jnp.float32) * scd_ref[...] + shd_ref[...]
    o_ref[...] = jnp.maximum(main + ident, 0.0)


def _residual_id_kernel(y3_ref, x_ref, sc3_ref, sh3_ref, o_ref):
    main = y3_ref[...].astype(jnp.float32) * sc3_ref[...] + sh3_ref[...]
    o_ref[...] = jnp.maximum(main + x_ref[...], 0.0)


# ---------------------------------------------------------------- wrapper ----

def bottleneck_pallas(x_nchw, p, stride):
    N, Cin, H, W = x_nchw.shape
    P = p['w1'].shape[1]
    C4 = 4 * P
    s = stride
    has_ds = (s > 1) or (Cin != C4)
    Ho, Wo = H // s, W // s
    HW, HWo = H * W, Ho * Wo
    f32 = jnp.float32
    bf16 = jnp.bfloat16

    Cin_p, P_p, C4_p = _rup(Cin, _LANE), _rup(P, _LANE), _rup(C4, _LANE)

    # Layout glue: NCHW -> (pixels, channels), zero-pad channels to lane width.
    # x stays f32: it feeds the residual add (identity path) bit-exactly.
    x_flat = jnp.transpose(x_nchw, (0, 2, 3, 1)).reshape(N * HW, Cin).astype(f32)
    x_p = _pad_last(x_flat, Cin_p)

    # Parameters: pad to lane width; matmul weights to bf16 (MXU-native).
    w1 = _pad_last(p['w1'].astype(f32), Cin_p, P_p).astype(bf16)
    w2 = _pad_last(p['w2'].reshape(9, P, P).astype(f32), P_p, P_p).astype(bf16)
    w3 = _pad_last(p['w3'].astype(f32), P_p, C4_p).astype(bf16)
    g1, b1 = _pad_last(p['g1'].astype(f32), P_p), _pad_last(p['b1'].astype(f32), P_p)
    g2, b2 = _pad_last(p['g2'].astype(f32), P_p), _pad_last(p['b2'].astype(f32), P_p)
    g3, b3 = _pad_last(p['g3'].astype(f32), C4_p), _pad_last(p['b3'].astype(f32), C4_p)
    if has_ds:
        wd = _pad_last(p['wd'].astype(f32), Cin_p, C4_p).astype(bf16)
        gd, bd = _pad_last(p['gd'].astype(f32), C4_p), _pad_last(p['bd'].astype(f32), C4_p)

    # -------- stage 1: conv1 (1x1, row-tiled matmul) + bn1 stat partials --------
    tile1 = _row_tile(N * HW)
    T1 = (N * HW) // tile1
    y1, st1 = pl.pallas_call(
        _conv1x1_stats_kernel,
        grid=(T1,),
        out_shape=(jax.ShapeDtypeStruct((N * HW, P_p), bf16),
                   jax.ShapeDtypeStruct((T1 * 8, P_p), f32)),
        in_specs=[pl.BlockSpec((tile1, Cin_p), lambda i: (i, 0)),
                  pl.BlockSpec((Cin_p, P_p), lambda i: (0, 0))],
        out_specs=(pl.BlockSpec((tile1, P_p), lambda i: (i, 0)),
                   pl.BlockSpec((8, P_p), lambda i: (i, 0))),
        compiler_params=_CPARAMS,
    )(x_p, w1)
    sc1, sh1 = _bn_fold(st1, N * HW, g1, b1)

    # -------- stage 2: bn1+relu fused into conv2 (3x3), one image per step ------
    y2, st2 = pl.pallas_call(
        _make_conv3x3_kernel(H, W, P_p),
        grid=(N,),
        out_shape=(jax.ShapeDtypeStruct((N * HW, P_p), bf16),
                   jax.ShapeDtypeStruct((N * 8, P_p), f32)),
        in_specs=[pl.BlockSpec((HW, P_p), lambda n: (n, 0)),
                  pl.BlockSpec((1, P_p), lambda n: (0, 0)),
                  pl.BlockSpec((1, P_p), lambda n: (0, 0)),
                  pl.BlockSpec((9, P_p, P_p), lambda n: (0, 0, 0))],
        out_specs=(pl.BlockSpec((HW, P_p), lambda n: (n, 0)),
                   pl.BlockSpec((8, P_p), lambda n: (n, 0))),
        scratch_shapes=[pltpu.VMEM((HW + 2 * (W + 1), P_p), f32)],
        compiler_params=_CPARAMS,
    )(y1, sc1, sh1, w2)
    sc2, sh2 = _bn_fold(st2, N * HW, g2, b2)

    # -------- stage 3: bn2+relu + avgpool + conv3 (+ downsample branch) ---------
    # Free HBM re-views exposing the s x s pooling window as explicit axes;
    # bn2 scale/shift pre-tiled to (1, s*C) so the kernel applies them in one
    # lane-aligned multiply-add over the whole block.
    y2v = y2.reshape(N * Ho, s, Wo, s * P_p)
    sc2_t, sh2_t = jnp.tile(sc2, (1, s)), jnp.tile(sh2, (1, s))
    in_specs3 = [pl.BlockSpec((Ho, s, Wo, s * P_p), lambda n: (n, 0, 0, 0)),
                 pl.BlockSpec((1, s * P_p), lambda n: (0, 0)),
                 pl.BlockSpec((1, s * P_p), lambda n: (0, 0))]
    inputs3 = [y2v, sc2_t, sh2_t]
    if has_ds:
        xv = x_p.reshape(N * Ho, s, Wo, s * Cin_p)
        in_specs3.append(pl.BlockSpec((Ho, s, Wo, s * Cin_p), lambda n: (n, 0, 0, 0)))
        inputs3.append(xv)
    in_specs3.append(pl.BlockSpec((P_p, C4_p), lambda n: (0, 0)))
    inputs3.append(w3)
    if has_ds:
        in_specs3.append(pl.BlockSpec((Cin_p, C4_p), lambda n: (0, 0)))
        inputs3.append(wd)

    out_shapes3 = [jax.ShapeDtypeStruct((N * HWo, C4_p), bf16)]
    out_specs3 = [pl.BlockSpec((HWo, C4_p), lambda n: (n, 0))]
    if has_ds:
        out_shapes3.append(jax.ShapeDtypeStruct((N * HWo, C4_p), bf16))
        out_specs3.append(pl.BlockSpec((HWo, C4_p), lambda n: (n, 0)))
    out_shapes3.append(jax.ShapeDtypeStruct((N * 8, C4_p), f32))
    out_specs3.append(pl.BlockSpec((8, C4_p), lambda n: (n, 0)))
    if has_ds:
        out_shapes3.append(jax.ShapeDtypeStruct((N * 8, C4_p), f32))
        out_specs3.append(pl.BlockSpec((8, C4_p), lambda n: (n, 0)))

    res3 = pl.pallas_call(
        _make_pool_proj_kernel(s, Ho, Wo, P_p, Cin_p, has_ds),
        grid=(N,),
        out_shape=tuple(out_shapes3),
        in_specs=in_specs3,
        out_specs=tuple(out_specs3),
        compiler_params=_CPARAMS,
    )(*inputs3)
    if has_ds:
        y3, yd, st3, std_ = res3
    else:
        y3, st3 = res3
    sc3, sh3 = _bn_fold(st3, N * HWo, g3, b3)
    if has_ds:
        scd, shd = _bn_fold(std_, N * HWo, gd, bd)

    # -------- stage 4: bn3 (+ bn_ds) + residual add + relu, row-tiled -----------
    tile4 = _row_tile(N * HWo)
    T4 = (N * HWo) // tile4
    row_spec = pl.BlockSpec((tile4, C4_p), lambda i: (i, 0))
    vec_spec = pl.BlockSpec((1, C4_p), lambda i: (0, 0))
    if has_ds:
        out = pl.pallas_call(
            _residual_ds_kernel,
            grid=(T4,),
            out_shape=jax.ShapeDtypeStruct((N * HWo, C4_p), f32),
            in_specs=[row_spec, row_spec, vec_spec, vec_spec, vec_spec, vec_spec],
            out_specs=row_spec,
            compiler_params=_CPARAMS,
        )(y3, yd, sc3, sh3, scd, shd)
    else:
        out = pl.pallas_call(
            _residual_id_kernel,
            grid=(T4,),
            out_shape=jax.ShapeDtypeStruct((N * HWo, C4_p), f32),
            in_specs=[row_spec, row_spec, vec_spec, vec_spec],
            out_specs=row_spec,
            compiler_params=_CPARAMS,
        )(y3, x_p, sc3, sh3)

    out = out[:, :C4].reshape(N, Ho, Wo, C4)
    return jnp.transpose(out, (0, 3, 1, 2))  # back to NCHW


# ---------------------------------------------- deterministic parameters ----

def make_params(key, inplanes, planes, stride):
    P, C4 = planes, 4 * planes
    keys = iter(jax.random.split(key, 16))

    def nrm(shape, scale=0.1):
        return (scale * jax.random.normal(next(keys), shape)).astype(jnp.float32)

    p = {
        'w1': nrm((inplanes, P)),
        'g1': 1.0 + nrm((1, P)), 'b1': nrm((1, P)),
        'w2': nrm((3, 3, P, P)),           # HWIO
        'g2': 1.0 + nrm((1, P)), 'b2': nrm((1, P)),
        'w3': nrm((P, C4)),
        'g3': 1.0 + nrm((1, C4)), 'b3': nrm((1, C4)),
    }
    if stride > 1 or inplanes != C4:
        p['wd'] = nrm((inplanes, C4))
        p['gd'] = 1.0 + nrm((1, C4))
        p['bd'] = nrm((1, C4))
    return p


# ------------------------------------------------ pure-JAX reference --------

def bottleneck_ref(x_nchw, p, stride):
    C4 = p['w3'].shape[1]
    Cin = x_nchw.shape[1]
    has_ds = (stride > 1) or (Cin != C4)
    x = jnp.transpose(x_nchw, (0, 2, 3, 1)).astype(jnp.float32)

    def conv(v, w, pad):
        return jax.lax.conv_general_dilated(
            v, w, window_strides=(1, 1), padding=pad,
            dimension_numbers=('NHWC', 'HWIO', 'NHWC'))

    def bn(v, g, b):
        m = jnp.mean(v, axis=(0, 1, 2), keepdims=True)
        var = jnp.mean((v - m) ** 2, axis=(0, 1, 2), keepdims=True)
        return (v - m) * jax.lax.rsqrt(var + _EPS) * g + b

    def avgpool(v, s):
        n, h, w, c = v.shape
        return v.reshape(n, h // s, s, w // s, s, c).mean(axis=(2, 4))

    h = jax.nn.relu(bn(conv(x, p['w1'][None, None], [(0, 0), (0, 0)]), p['g1'], p['b1']))
    h = jax.nn.relu(bn(conv(h, p['w2'], [(1, 1), (1, 1)]), p['g2'], p['b2']))
    if stride > 1:
        h = avgpool(h, stride)
    out = bn(conv(h, p['w3'][None, None], [(0, 0), (0, 0)]), p['g3'], p['b3'])
    if has_ds:
        ident = avgpool(x, stride) if stride > 1 else x
        ident = bn(conv(ident, p['wd'][None, None], [(0, 0), (0, 0)]), p['gd'], p['bd'])
    else:
        ident = x
    out = jax.nn.relu(out + ident)
    return jnp.transpose(out, (0, 3, 1, 2))


if __name__ == "__main__":
    root = jax.random.PRNGKey(0)
    k1, k2, k3, k4 = jax.random.split(root, 4)

    # Tolerance accounts for bf16 MXU operands AND bf16 storage of the
    # intermediate activations across three matmul stages.
    RTOL = ATOL = 4e-2

    # Config A: stride=2 -> AvgPool + downsample branch exercised.
    N, Cin, H, W, planes, stride = 2, 16, 16, 16, 8, 2
    x = jax.random.normal(k1, (N, Cin, H, W), jnp.float32)
    params = make_params(k2, Cin, planes, stride)
    out = jax.block_until_ready(bottleneck_pallas(x, params, stride))
    assert out.shape == (N, 4 * planes, H // stride, W // stride)
    ref = bottleneck_ref(x, params, stride)
    np.testing.assert_allclose(np.asarray(out), np.asarray(ref), rtol=RTOL, atol=ATOL)

    # Config B: stride=1 and inplanes == 4*planes -> identity shortcut.
    N2, Cin2, H2, W2, planes2, stride2 = 2, 32, 8, 8, 8, 1
    x2 = jax.random.normal(k3, (N2, Cin2, H2, W2), jnp.float32)
    params2 = make_params(k4, Cin2, planes2, stride2)
    out2 = jax.block_until_ready(bottleneck_pallas(x2, params2, stride2))
    assert out2.shape == (N2, 4 * planes2, H2, W2)
    ref2 = bottleneck_ref(x2, params2, stride2)
    np.testing.assert_allclose(np.asarray(out2), np.asarray(ref2), rtol=RTOL, atol=ATOL)

    print("KERNEL_OK")
</pallas_src>

<mosaic_0001>
module attributes {stable_mosaic.version = 11 : i64} {
  func.func @_conv1x1_stats_kernel(%arg0: i32, %arg1: memref<512x128xf32, #tpu.memory_space<vmem>>, %arg2: memref<128x128xbf16, #tpu.memory_space<vmem>>, %arg3: memref<512x128xbf16, #tpu.memory_space<vmem>>, %arg4: memref<8x128xf32, #tpu.memory_space<vmem>>) attributes {dimension_semantics = [#tpu.dimension_semantics<parallel>], iteration_bounds = array<i64: 1>, scalar_prefetch = 0 : i64, scratch_operands = 0 : i64, tpu.core_type = #tpu.core_type<tc>, window_params = [{transform_indices = @transform_0, window_bounds = array<i64: 512, 128>}, {pipeline_mode = #tpu.pipeline_mode<synchronous>, transform_indices = @transform_1, window_bounds = array<i64: 128, 128>}, {transform_indices = @transform_2, window_bounds = array<i64: 512, 128>}, {transform_indices = @transform_3, window_bounds = array<i64: 8, 128>}]} {
    %c0 = arith.constant 0 : index
    %c0_0 = arith.constant 0 : index
    %0 = vector.load %arg1[%c0, %c0_0] : memref<512x128xf32, #tpu.memory_space<vmem>>, vector<512x128xf32>
    %1 = arith.truncf %0 : vector<512x128xf32> to vector<512x128xbf16>
    %c0_1 = arith.constant 0 : index
    %c0_2 = arith.constant 0 : index
    %2 = vector.load %arg2[%c0_1, %c0_2] : memref<128x128xbf16, #tpu.memory_space<vmem>>, vector<128x128xbf16>
    %cst = arith.constant dense<0.000000e+00> : vector<512x128xf32>
    %3 = tpu.matmul %1, %2, %cst {dimension_numbers = #tpu.dot_dimension_numbers<[1], [0], [0], [1], [0, 0, 1, 1], [], []>} : vector<512x128xbf16>, vector<128x128xbf16>, vector<512x128xf32> -> vector<512x128xf32>
    %4 = arith.truncf %3 : vector<512x128xf32> to vector<512x128xbf16>
    %c0_3 = arith.constant 0 : index
    %c0_4 = arith.constant 0 : index
    %5 = vector.load %arg3[%c0_3, %c0_4] : memref<512x128xbf16, #tpu.memory_space<vmem>>, vector<512x128xbf16>
    tpu.vector_store %arg3[%c0_3, %c0_4], %4 {strides = array<i32>} : memref<512x128xbf16, #tpu.memory_space<vmem>>, vector<512x128xbf16>,
    %cst_5 = arith.constant 0.000000e+00 : f32
    %6 = vector.broadcast %cst_5 : f32 to vector<8x128xf32>
    %c0_6 = arith.constant 0 : index
    %c0_7 = arith.constant 0 : index
    %7 = vector.load %arg4[%c0_6, %c0_7] : memref<8x128xf32, #tpu.memory_space<vmem>>, vector<8x128xf32>
    tpu.vector_store %arg4[%c0_6, %c0_7], %6 {strides = array<i32>} : memref<8x128xf32, #tpu.memory_space<vmem>>, vector<8x128xf32>,
    %cst_8 = arith.constant dense<0.000000e+00> : vector<128xf32>
    %8 = vector.multi_reduction <add>, %3, %cst_8 [0] : vector<512x128xf32> to vector<128xf32>
    %9 = vector.shape_cast %8 : vector<128xf32> to vector<1x128xf32>
    %c0_9 = arith.constant 0 : index
    %c0_10 = arith.constant 0 : index
    %10 = vector.load %arg4[%c0_9, %c0_10] : memref<8x128xf32, #tpu.memory_space<vmem>>, vector<1x128xf32>
    tpu.vector_store %arg4[%c0_9, %c0_10], %9 {strides = array<i32>} : memref<8x128xf32, #tpu.memory_space<vmem>>, vector<1x128xf32>,
    %11 = arith.mulf %3, %3 : vector<512x128xf32>
    %cst_11 = arith.constant dense<0.000000e+00> : vector<128xf32>
    %12 = vector.multi_reduction <add>, %11, %cst_11 [0] : vector<512x128xf32> to vector<128xf32>
    %13 = vector.shape_cast %12 : vector<128xf32> to vector<1x128xf32>
    %c1 = arith.constant 1 : index
    %c0_12 = arith.constant 0 : index
    %14 = vector.load %arg4[%c1, %c0_12] : memref<8x128xf32, #tpu.memory_space<vmem>>, vector<1x128xf32>
    tpu.vector_store %arg4[%c1, %c0_12], %13 {strides = array<i32>} : memref<8x128xf32, #tpu.memory_space<vmem>>, vector<1x128xf32>,
    return
  }
  func.func @transform_0(%arg0: i32) -> (i32, i32) {
    %c0_i32 = arith.constant 0 : i32
    %c0_i32_0 = arith.constant 0 : i32
    return %arg0, %c0_i32 : i32, i32
  }
  func.func @transform_1(%arg0: i32) -> (i32, i32) {
    %c0_i32 = arith.constant 0 : i32
    %c0_i32_0 = arith.constant 0 : i32
    %c0_i32_1 = arith.constant 0 : i32
    return %c0_i32, %c0_i32_0 : i32, i32
  }
  func.func @transform_2(%arg0: i32) -> (i32, i32) {
    %c0_i32 = arith.constant 0 : i32
    %c0_i32_0 = arith.constant 0 : i32
    return %arg0, %c0_i32 : i32, i32
  }
  func.func @transform_3(%arg0: i32) -> (i32, i32) {
    %c0_i32 = arith.constant 0 : i32
    %c0_i32_0 = arith.constant 0 : i32
    return %arg0, %c0_i32 : i32, i32
  }
}

</mosaic_0001>

<llo_original>
// kernel: tpu_custom_call.1
$region0: #{tpu_custom_call.1}
  #allocation0 [shape = 'u32[]', space=smem, size = 0x4, offset = 0x4, fixed_abs, tag = 'smem constant byte address 0x4 - core index']
  #allocation1 [shape = 'u32[144,128]{1,0:T(1,128)}', space=vmem, size = 0x12000, scoped, tag = 'internal scratch']
  %s0 = inlined_call_operand.hbm [shape: f32[512,128], index: 0, kind: input, shape index: {}]
  %s1 = inlined_call_operand.hbm [shape: bf16[128,128], index: 1, kind: input, shape index: {}]
  %s2 = inlined_call_operand.hbm [shape: bf16[512,128], index: 2, kind: output, shape index: {0}]
  %s3 = inlined_call_operand.hbm [shape: f32[8,128], index: 3, kind: output, shape index: {1}]
  %4 = xla_tuple %s2, %s3
  %s5 = sld [smem:[#allocation0]]
  $region34: #{tpu_custom_call.1} parent=0
    _
  %s7 = ssub.s32 1, %s5
  %s8 = scalar_select 0, %s7, %s5
  $region1: #{tpu_custom_call.1} parent=0
    #allocation2 [shape = 'u8[262144]{0}', space=vmem, size = 0x40000, scoped, tag = 'input window, operand 0, single buffered']
    #allocation3 [shape = 's32[1]{0}', space=sflag, size = 0x4, scoped, tag = 'scoped memory for tpu_custom_call.1']
    #allocation4 [shape = 's32[1]{0}', space=sflag, size = 0x4, scoped, tag = 'scoped memory for tpu_custom_call.1']
    #allocation5 [shape = 'u8[32768]{0}', space=vmem, size = 0x8000, scoped, tag = 'input window, operand 1, single buffered']
    #allocation6 [shape = 's32[1]{0}', space=sflag, size = 0x4, scoped, tag = 'scoped memory for tpu_custom_call.1']
    #allocation7 [shape = 'u8[131072]{0}', space=vmem, size = 0x20000, scoped, tag = 'output window, operand 0, single buffered']
    #allocation8 [shape = 'u8[4096]{0}', space=vmem, size = 0x1000, scoped, tag = 'output window, operand 1, single buffered']
    #allocation9 [shape = 's32[1]{0}', space=sflag, size = 0x4, scoped, tag = 'scoped memory for tpu_custom_call.1']
    %9 = vsyncpa [#allocation3], 0
    %10 = vsyncpa [#allocation6], 0
    %11 = vsyncpa [#allocation4], 0
    %12 = vsyncpa [#allocation9], 0
    // Predicated region
    $region2: #{tpu_custom_call.1} parent=1 // pred_check
      _
    $region3: #{tpu_custom_call.1} parent=1 // pred_check_branch
      %14 = sbr.rel (0) target = $region5
    $region4: #{tpu_custom_call.1} parent=1 // pred_region
      %s16 = ssub.s32 8192, 8192
      %17 = vsyncadd [#allocation3], %s16
      %s18 = sshll.u32 [#allocation2], 4
      %s19 = int_to_ptr.vmem [resolvable:$true] %s18
      %24 = dma.hbm_to_vmem [thread:$0]  %s0, 8192, %s19, [#allocation3], 128, 128, 8
    $region5: #{tpu_custom_call.1} parent=1 // pred_fallthru
      _
    // Predicated region
    $region6: #{tpu_custom_call.1} parent=1 // pred_check
      _
    $region7: #{tpu_custom_call.1} parent=1 // pred_check_branch
      %26 = sbr.rel (0) target = $region9
    $region8: #{tpu_custom_call.1} parent=1 // pred_region
      %s28 = ssub.s32 1024, 1024
      %29 = vsyncadd [#allocation6], %s28
      %s30 = sshll.u32 [#allocation5], 4
      %s31 = int_to_ptr.vmem [resolvable:$true] %s30
      %36 = dma.hbm_to_vmem [thread:$0]  %s1, 1024, %s31, [#allocation6], 64, 64, 4
    $region9: #{tpu_custom_call.1} parent=1 // pred_fallthru
      _
    // Predicated region
    $region10: #{tpu_custom_call.1} parent=1 // pred_check
      _
    $region11: #{tpu_custom_call.1} parent=1 // pred_check_branch
      %38 = sbr.rel (0) target = $region13
    $region12: #{tpu_custom_call.1} parent=1 // pred_region
      %39 = dma.done [#allocation3], 8192
    $region13: #{tpu_custom_call.1} parent=1 // pred_fallthru
      _
    // Predicated region
    $region14: #{tpu_custom_call.1} parent=1 // pred_check
      _
    $region15: #{tpu_custom_call.1} parent=1 // pred_check_branch
      %41 = sbr.rel (0) target = $region17
    $region16: #{tpu_custom_call.1} parent=1 // pred_region
      %42 = dma.done [#allocation6], 1024
    $region17: #{tpu_custom_call.1} parent=1 // pred_fallthru
      _
    %v44 = vld [vmem:[#allocation2] sm:$0xff]
    %v45 = vld [vmem:[#allocation2 + $0x8] sm:$0xff]
    %v46 = vld [vmem:[#allocation2 + $0x10] sm:$0xff]
    %v47 = vld [vmem:[#allocation2 + $0x18] sm:$0xff]
    %v48 = vld [vmem:[#allocation2 + $0x20] sm:$0xff]
    %v49 = vld [vmem:[#allocation2 + $0x28] sm:$0xff]
    %v50 = vld [vmem:[#allocation2 + $0x30] sm:$0xff]
    %v51 = vld [vmem:[#allocation2 + $0x38] sm:$0xff]
    %v52 = vld [vmem:[#allocation2 + $0x40] sm:$0xff]
    %v53 = vld [vmem:[#allocation2 + $0x48] sm:$0xff]
    %v54 = vld [vmem:[#allocation2 + $0x50] sm:$0xff]
    %v55 = vld [vmem:[#allocation2 + $0x58] sm:$0xff]
    %v56 = vld [vmem:[#allocation2 + $0x60] sm:$0xff]
    %v57 = vld [vmem:[#allocation2 + $0x68] sm:$0xff]
    %v58 = vld [vmem:[#allocation2 + $0x70] sm:$0xff]
    %v59 = vld [vmem:[#allocation2 + $0x78] sm:$0xff]
    %v60 = vld [vmem:[#allocation2 + $0x80] sm:$0xff]
    %v61 = vld [vmem:[#allocation2 + $0x88] sm:$0xff]
    %v62 = vld [vmem:[#allocation2 + $0x90] sm:$0xff]
    %v63 = vld [vmem:[#allocation2 + $0x98] sm:$0xff]
    %v64 = vld [vmem:[#allocation2 + $0xa0] sm:$0xff]
    %v65 = vld [vmem:[#allocation2 + $0xa8] sm:$0xff]
    %v66 = vld [vmem:[#allocation2 + $0xb0] sm:$0xff]
    %v67 = vld [vmem:[#allocation2 + $0xb8] sm:$0xff]
    %v68 = vld [vmem:[#allocation2 + $0xc0] sm:$0xff]
    %v69 = vld [vmem:[#allocation2 + $0xc8] sm:$0xff]
    %v70 = vld [vmem:[#allocation2 + $0xd0] sm:$0xff]
    %v71 = vld [vmem:[#allocation2 + $0xd8] sm:$0xff]
    %v72 = vld [vmem:[#allocation2 + $0xe0] sm:$0xff]
    %v73 = vld [vmem:[#allocation2 + $0xe8] sm:$0xff]
    %v74 = vld [vmem:[#allocation2 + $0xf0] sm:$0xff]
    %v75 = vld [vmem:[#allocation2 + $0xf8] sm:$0xff]
    %v76 = vld [vmem:[#allocation2 + $0x100] sm:$0xff]
    %v77 = vld [vmem:[#allocation2 + $0x108] sm:$0xff]
    %v78 = vld [vmem:[#allocation2 + $0x110] sm:$0xff]
    %v79 = vld [vmem:[#allocation2 + $0x118] sm:$0xff]
    %v80 = vld [vmem:[#allocation2 + $0x120] sm:$0xff]
    %v81 = vld [vmem:[#allocation2 + $0x128] sm:$0xff]
    %v82 = vld [vmem:[#allocation2 + $0x130] sm:$0xff]
    %v83 = vld [vmem:[#allocation2 + $0x138] sm:$0xff]
    %v84 = vld [vmem:[#allocation2 + $0x140] sm:$0xff]
    %v85 = vld [vmem:[#allocation2 + $0x148] sm:$0xff]
    %v86 = vld [vmem:[#allocation2 + $0x150] sm:$0xff]
    %v87 = vld [vmem:[#allocation2 + $0x158] sm:$0xff]
    %v88 = vld [vmem:[#allocation2 + $0x160] sm:$0xff]
    %v89 = vld [vmem:[#allocation2 + $0x168] sm:$0xff]
    %v90 = vld [vmem:[#allocation2 + $0x170] sm:$0xff]
    %v91 = vld [vmem:[#allocation2 + $0x178] sm:$0xff]
    %v92 = vld [vmem:[#allocation2 + $0x180] sm:$0xff]
    %v93 = vld [vmem:[#allocation2 + $0x188] sm:$0xff]
    %v94 = vld [vmem:[#allocation2 + $0x190] sm:$0xff]
    %v95 = vld [vmem:[#allocation2 + $0x198] sm:$0xff]
    %v96 = vld [vmem:[#allocation2 + $0x1a0] sm:$0xff]
    %v97 = vld [vmem:[#allocation2 + $0x1a8] sm:$0xff]
    %v98 = vld [vmem:[#allocation2 + $0x1b0] sm:$0xff]
    %v99 = vld [vmem:[#allocation2 + $0x1b8] sm:$0xff]
    %v100 = vld [vmem:[#allocation2 + $0x1c0] sm:$0xff]
    %v101 = vld [vmem:[#allocation2 + $0x1c8] sm:$0xff]
    %v102 = vld [vmem:[#allocation2 + $0x1d0] sm:$0xff]
    %v103 = vld [vmem:[#allocation2 + $0x1d8] sm:$0xff]
    %v104 = vld [vmem:[#allocation2 + $0x1e0] sm:$0xff]
    %v105 = vld [vmem:[#allocation2 + $0x1e8] sm:$0xff]
    %v106 = vld [vmem:[#allocation2 + $0x1f0] sm:$0xff]
    %v107 = vld [vmem:[#allocation2 + $0x1f8] sm:$0xff]
    %v108 = vpack.c.bf16 %v45, %v44
    %v109 = vpack.c.bf16 %v47, %v46
    %v110 = vpack.c.bf16 %v49, %v48
    %v111 = vpack.c.bf16 %v51, %v50
    %v112 = vpack.c.bf16 %v53, %v52
    %v113 = vpack.c.bf16 %v55, %v54
    %v114 = vpack.c.bf16 %v57, %v56
    %v115 = vpack.c.bf16 %v59, %v58
    %v116 = vpack.c.bf16 %v61, %v60
    %v117 = vpack.c.bf16 %v63, %v62
    %v118 = vpack.c.bf16 %v65, %v64
    %v119 = vpack.c.bf16 %v67, %v66
    %v120 = vpack.c.bf16 %v69, %v68
    %v121 = vpack.c.bf16 %v71, %v70
    %v122 = vpack.c.bf16 %v73, %v72
    %v123 = vpack.c.bf16 %v75, %v74
    %v124 = vpack.c.bf16 %v77, %v76
    %v125 = vpack.c.bf16 %v79, %v78
    %v126 = vpack.c.bf16 %v81, %v80
    %v127 = vpack.c.bf16 %v83, %v82
    %v128 = vpack.c.bf16 %v85, %v84
    %v129 = vpack.c.bf16 %v87, %v86
    %v130 = vpack.c.bf16 %v89, %v88
    %v131 = vpack.c.bf16 %v91, %v90
    %v132 = vpack.c.bf16 %v93, %v92
    %v133 = vpack.c.bf16 %v95, %v94
    %v134 = vpack.c.bf16 %v97, %v96
    %v135 = vpack.c.bf16 %v99, %v98
    %v136 = vpack.c.bf16 %v101, %v100
    %v137 = vpack.c.bf16 %v103, %v102
    %v138 = vpack.c.bf16 %v105, %v104
    %v139 = vpack.c.bf16 %v107, %v106
    %v140 = vld [vmem:[#allocation5] sm:$0xf]
    %v141 = vld [vmem:[#allocation5 + $0x4] sm:$0xf]
    %v142 = vld [vmem:[#allocation5 + $0x8] sm:$0xf]
    %v143 = vld [vmem:[#allocation5 + $0xc] sm:$0xf]
    %v144 = vld [vmem:[#allocation5 + $0x10] sm:$0xf]
    %v145 = vld [vmem:[#allocation5 + $0x14] sm:$0xf]
    %v146 = vld [vmem:[#allocation5 + $0x18] sm:$0xf]
    %v147 = vld [vmem:[#allocation5 + $0x1c] sm:$0xf]
    %v148 = vld [vmem:[#allocation5 + $0x20] sm:$0xf]
    %v149 = vld [vmem:[#allocation5 + $0x24] sm:$0xf]
    %v150 = vld [vmem:[#allocation5 + $0x28] sm:$0xf]
    %v151 = vld [vmem:[#allocation5 + $0x2c] sm:$0xf]
    %v152 = vld [vmem:[#allocation5 + $0x30] sm:$0xf]
    %v153 = vld [vmem:[#allocation5 + $0x34] sm:$0xf]
    %v154 = vld [vmem:[#allocation5 + $0x38] sm:$0xf]
    %v155 = vld [vmem:[#allocation5 + $0x3c] sm:$0xf]
    %v172 = vunpack.c.l.b16 %v140
    %v173 = vunpack.c.l.b16 %v141
    %v174 = vunpack.c.l.b16 %v142
    %v175 = vunpack.c.l.b16 %v143
    %v176 = vunpack.c.l.b16 %v144
    %v177 = vunpack.c.l.b16 %v145
    %v178 = vunpack.c.l.b16 %v146
    %v179 = vunpack.c.l.b16 %v147
    %v180 = vunpack.c.l.b16 %v148
    %v181 = vunpack.c.l.b16 %v149
    %v182 = vunpack.c.l.b16 %v150
    %v183 = vunpack.c.l.b16 %v151
    %v184 = vunpack.c.l.b16 %v152
    %v185 = vunpack.c.l.b16 %v153
    %v186 = vunpack.c.l.b16 %v154
    %v187 = vunpack.c.l.b16 %v155
    %v188 = vpack.c.b16 %v173, %v172
    %v189 = vpack.c.b16 %v175, %v174
    %v190 = vpack.c.b16 %v177, %v176
    %v191 = vpack.c.b16 %v179, %v178
    %v192 = vpack.c.b16 %v181, %v180
    %v193 = vpack.c.b16 %v183, %v182
    %v194 = vpack.c.b16 %v185, %v184
    %v195 = vpack.c.b16 %v187, %v186
    %204 = vmatprep.subr.bf16.mxu0 0
    %205 = vmatpush1.bf16.msra.mxu0 %v195
    %206 = vmatprep.subr.bf16.mxu0 0
    %207 = vmatpush1.bf16.msra.mxu0 %v194
    %208 = vmatprep.subr.bf16.mxu0 0
    %209 = vmatpush1.bf16.msra.mxu0 %v193
    %210 = vmatprep.subr.bf16.mxu0 0
    %211 = vmatpush1.bf16.msra.mxu0 %v192
    %212 = vmatprep.subr.bf16.mxu0 0
    %213 = vmatpush1.bf16.msra.mxu0 %v191
    %214 = vmatprep.subr.bf16.mxu0 0
    %215 = vmatpush1.bf16.msra.mxu0 %v190
    %216 = vmatprep.subr.bf16.mxu0 0
    %217 = vmatpush1.bf16.msra.mxu0 %v189
    %218 = vmatprep.subr.bf16.mxu0 0
    %219 = vmatpush1.bf16.msra.mxu0 %v188
    %220 = vmatprep.subr.bf16.mxu0 0
    %221 = vmatpush2.bf16.msra.mxu0 0
    %222 = vmatprep.subr.bf16.mxu0 0
    %223 = vmatpush2.bf16.msra.mxu0 0
    %224 = vmatprep.subr.bf16.mxu0 0
    %225 = vmatpush2.bf16.msra.mxu0 0
    %226 = vmatprep.subr.bf16.mxu0 0
    %227 = vmatpush2.bf16.msra.mxu0 0
    %228 = vmatprep.subr.bf16.mxu0 0
    %229 = vmatpush2.bf16.msra.mxu0 0
    %230 = vmatprep.subr.bf16.mxu0 0
    %231 = vmatpush2.bf16.msra.mxu0 0
    %232 = vmatprep.subr.bf16.mxu0 0
    %233 = vmatpush2.bf16.msra.mxu0 0
    %234 = vmatprep.subr.bf16.mxu0 0
    %235 = vmatpush2.bf16.msra.mxu0 0
    %236 = vmatprep.mubr.bf16.mxu0 0
    %237 = vmatmul.mubr.bf16.gmra.mxu0 %v108
    %v238 = vpop.f32.mrf.mxu0
    %v239 = vadd.f32 0.0, %v238
    %v240 = vpop.f32.mrf.mxu0
    %v241 = vpop.f32.mrf.mxu0
    %v242 = vadd.f32 0.0, %v241
    %v243 = vpop.f32.mrf.mxu0
    %244 = vmatprep.mubr.bf16.mxu0 0
    %245 = vmatmul.mubr.bf16.gmra.mxu0 %v109
    %v246 = vpop.f32.mrf.mxu0
    %v247 = vadd.f32 0.0, %v246
    %v248 = vpop.f32.mrf.mxu0
    %v249 = vpop.f32.mrf.mxu0
    %v250 = vadd.f32 0.0, %v249
    %v251 = vpop.f32.mrf.mxu0
    %252 = vmatprep.mubr.bf16.mxu0 0
    %253 = vmatmul.mubr.bf16.gmra.mxu0 %v110
    %v254 = vpop.f32.mrf.mxu0
    %v255 = vadd.f32 0.0, %v254
    %v256 = vpop.f32.mrf.mxu0
    %v257 = vpop.f32.mrf.mxu0
    %v258 = vadd.f32 0.0, %v257
    %v259 = vpop.f32.mrf.mxu0
    %260 = vmatprep.mubr.bf16.mxu0 0
    %261 = vmatmul.mubr.bf16.gmra.mxu0 %v111
    %v262 = vpop.f32.mrf.mxu0
    %v263 = vadd.f32 0.0, %v262
    %v264 = vpop.f32.mrf.mxu0
    %v265 = vpop.f32.mrf.mxu0
    %v266 = vadd.f32 0.0, %v265
    %v267 = vpop.f32.mrf.mxu0
    %268 = vmatprep.mubr.bf16.mxu0 0
    %269 = vmatmul.mubr.bf16.gmra.mxu0 %v112
    %v270 = vpop.f32.mrf.mxu0
    %v271 = vadd.f32 0.0, %v270
    %v272 = vpop.f32.mrf.mxu0
    %v273 = vpop.f32.mrf.mxu0
    %v274 = vadd.f32 0.0, %v273
    %v275 = vpop.f32.mrf.mxu0
    %276 = vmatprep.mubr.bf16.mxu0 0
    %277 = vmatmul.mubr.bf16.gmra.mxu0 %v113
    %v278 = vpop.f32.mrf.mxu0
    %v279 = vadd.f32 0.0, %v278
    %v280 = vpop.f32.mrf.mxu0
    %v281 = vpop.f32.mrf.mxu0
    %v282 = vadd.f32 0.0, %v281
    %v283 = vpop.f32.mrf.mxu0
    %284 = vmatprep.mubr.bf16.mxu0 0
    %285 = vmatmul.mubr.bf16.gmra.mxu0 %v114
    %v286 = vpop.f32.mrf.mxu0
    %v287 = vadd.f32 0.0, %v286
    %v288 = vpop.f32.mrf.mxu0
    %v289 = vpop.f32.mrf.mxu0
    %v290 = vadd.f32 0.0, %v289
    %v291 = vpop.f32.mrf.mxu0
    %292 = vmatprep.mubr.bf16.mxu0 0
    %293 = vmatmul.mubr.bf16.gmra.mxu0 %v115
    %v294 = vpop.f32.mrf.mxu0
    %v295 = vadd.f32 0.0, %v294
    %v296 = vpop.f32.mrf.mxu0
    %v297 = vpop.f32.mrf.mxu0
    %v298 = vadd.f32 0.0, %v297
    %v299 = vpop.f32.mrf.mxu0
    %300 = vmatprep.mubr.bf16.mxu0 0
    %301 = vmatmul.mubr.bf16.gmra.mxu0 %v116
    %v302 = vpop.f32.mrf.mxu0
    %v303 = vadd.f32 0.0, %v302
    %v304 = vpop.f32.mrf.mxu0
    %v305 = vpop.f32.mrf.mxu0
    %v306 = vadd.f32 0.0, %v305
    %v307 = vpop.f32.mrf.mxu0
    %308 = vmatprep.mubr.bf16.mxu0 0
    %309 = vmatmul.mubr.bf16.gmra.mxu0 %v117
    %v310 = vpop.f32.mrf.mxu0
    %v311 = vadd.f32 0.0, %v310
    %v312 = vpop.f32.mrf.mxu0
    %v313 = vpop.f32.mrf.mxu0
    %v314 = vadd.f32 0.0, %v313
    %v315 = vpop.f32.mrf.mxu0
    %316 = vmatprep.mubr.bf16.mxu0 0
    %317 = vmatmul.mubr.bf16.gmra.mxu0 %v118
    %v318 = vpop.f32.mrf.mxu0
    %v319 = vadd.f32 0.0, %v318
    %v320 = vpop.f32.mrf.mxu0
    %v321 = vpop.f32.mrf.mxu0
    %v322 = vadd.f32 0.0, %v321
    %v323 = vpop.f32.mrf.mxu0
    %324 = vmatprep.mubr.bf16.mxu0 0
    %325 = vmatmul.mubr.bf16.gmra.mxu0 %v119
    %v326 = vpop.f32.mrf.mxu0
    %v327 = vadd.f32 0.0, %v326
    %v328 = vpop.f32.mrf.mxu0
    %v329 = vpop.f32.mrf.mxu0
    %v330 = vadd.f32 0.0, %v329
    %v331 = vpop.f32.mrf.mxu0
    %332 = vmatprep.mubr.bf16.mxu0 0
    %333 = vmatmul.mubr.bf16.gmra.mxu0 %v120
    %v334 = vpop.f32.mrf.mxu0
    %v335 = vadd.f32 0.0, %v334
    %v336 = vpop.f32.mrf.mxu0
    %v337 = vpop.f32.mrf.mxu0
    %v338 = vadd.f32 0.0, %v337
    %v339 = vpop.f32.mrf.mxu0
    %340 = vmatprep.mubr.bf16.mxu0 0
    %341 = vmatmul.mubr.bf16.gmra.mxu0 %v121
    %v342 = vpop.f32.mrf.mxu0
    %v343 = vadd.f32 0.0, %v342
    %v344 = vpop.f32.mrf.mxu0
    %v345 = vpop.f32.mrf.mxu0
    %v346 = vadd.f32 0.0, %v345
    %v347 = vpop.f32.mrf.mxu0
    %348 = vmatprep.mubr.bf16.mxu0 0
    %349 = vmatmul.mubr.bf16.gmra.mxu0 %v122
    %v350 = vpop.f32.mrf.mxu0
    %v351 = vadd.f32 0.0, %v350
    %v352 = vpop.f32.mrf.mxu0
    %v353 = vpop.f32.mrf.mxu0
    %v354 = vadd.f32 0.0, %v353
    %v355 = vpop.f32.mrf.mxu0
    %356 = vmatprep.mubr.bf16.mxu0 0
    %357 = vmatmul.mubr.bf16.gmra.mxu0 %v123
    %v358 = vpop.f32.mrf.mxu0
    %v359 = vadd.f32 0.0, %v358
    %v360 = vpop.f32.mrf.mxu0
    %v361 = vpop.f32.mrf.mxu0
    %v362 = vadd.f32 0.0, %v361
    %v363 = vpop.f32.mrf.mxu0
    %364 = vmatprep.mubr.bf16.mxu0 0
    %365 = vmatmul.mubr.bf16.gmra.mxu0 %v124
    %v366 = vpop.f32.mrf.mxu0
    %v367 = vadd.f32 0.0, %v366
    %v368 = vpop.f32.mrf.mxu0
    %v369 = vpop.f32.mrf.mxu0
    %v370 = vadd.f32 0.0, %v369
    %v371 = vpop.f32.mrf.mxu0
    %372 = vmatprep.mubr.bf16.mxu0 0
    %373 = vmatmul.mubr.bf16.gmra.mxu0 %v125
    %v374 = vpop.f32.mrf.mxu0
    %v375 = vadd.f32 0.0, %v374
    %v376 = vpop.f32.mrf.mxu0
    %v377 = vpop.f32.mrf.mxu0
    %v378 = vadd.f32 0.0, %v377
    %v379 = vpop.f32.mrf.mxu0
    %380 = vmatprep.mubr.bf16.mxu0 0
    %381 = vmatmul.mubr.bf16.gmra.mxu0 %v126
    %v382 = vpop.f32.mrf.mxu0
    %v383 = vadd.f32 0.0, %v382
    %v384 = vpop.f32.mrf.mxu0
    %v385 = vpop.f32.mrf.mxu0
    %v386 = vadd.f32 0.0, %v385
    %v387 = vpop.f32.mrf.mxu0
    %388 = vmatprep.mubr.bf16.mxu0 0
    %389 = vmatmul.mubr.bf16.gmra.mxu0 %v127
    %v390 = vpop.f32.mrf.mxu0
    %v391 = vadd.f32 0.0, %v390
    %v392 = vpop.f32.mrf.mxu0
    %v393 = vpop.f32.mrf.mxu0
    %v394 = vadd.f32 0.0, %v393
    %v395 = vpop.f32.mrf.mxu0
    %396 = vmatprep.mubr.bf16.mxu0 0
    %397 = vmatmul.mubr.bf16.gmra.mxu0 %v128
    %v398 = vpop.f32.mrf.mxu0
    %v399 = vadd.f32 0.0, %v398
    %v400 = vpop.f32.mrf.mxu0
    %v401 = vpop.f32.mrf.mxu0
    %v402 = vadd.f32 0.0, %v401
    %v403 = vpop.f32.mrf.mxu0
    %404 = vmatprep.mubr.bf16.mxu0 0
    %405 = vmatmul.mubr.bf16.gmra.mxu0 %v129
    %v406 = vpop.f32.mrf.mxu0
    %v407 = vadd.f32 0.0, %v406
    %v408 = vpop.f32.mrf.mxu0
    %v409 = vpop.f32.mrf.mxu0
    %v410 = vadd.f32 0.0, %v409
    %v411 = vpop.f32.mrf.mxu0
    %412 = vmatprep.mubr.bf16.mxu0 0
    %413 = vmatmul.mubr.bf16.gmra.mxu0 %v130
    %v414 = vpop.f32.mrf.mxu0
    %v415 = vadd.f32 0.0, %v414
    %v416 = vpop.f32.mrf.mxu0
    %v417 = vpop.f32.mrf.mxu0
    %v418 = vadd.f32 0.0, %v417
    %v419 = vpop.f32.mrf.mxu0
    %420 = vmatprep.mubr.bf16.mxu0 0
    %421 = vmatmul.mubr.bf16.gmra.mxu0 %v131
    %v422 = vpop.f32.mrf.mxu0
    %v423 = vadd.f32 0.0, %v422
    %v424 = vpop.f32.mrf.mxu0
    %v425 = vpop.f32.mrf.mxu0
    %v426 = vadd.f32 0.0, %v425
    %v427 = vpop.f32.mrf.mxu0
    %428 = vmatprep.mubr.bf16.mxu0 0
    %429 = vmatmul.mubr.bf16.gmra.mxu0 %v132
    %v430 = vpop.f32.mrf.mxu0
    %v431 = vadd.f32 0.0, %v430
    %v432 = vpop.f32.mrf.mxu0
    %v433 = vpop.f32.mrf.mxu0
    %v434 = vadd.f32 0.0, %v433
    %v435 = vpop.f32.mrf.mxu0
    %436 = vmatprep.mubr.bf16.mxu0 0
    %437 = vmatmul.mubr.bf16.gmra.mxu0 %v133
    %v438 = vpop.f32.mrf.mxu0
    %v439 = vadd.f32 0.0, %v438
    %v440 = vpop.f32.mrf.mxu0
    %v441 = vpop.f32.mrf.mxu0
    %v442 = vadd.f32 0.0, %v441
    %v443 = vpop.f32.mrf.mxu0
    %444 = vmatprep.mubr.bf16.mxu0 0
    %445 = vmatmul.mubr.bf16.gmra.mxu0 %v134
    %v446 = vpop.f32.mrf.mxu0
    %v447 = vadd.f32 0.0, %v446
    %v448 = vpop.f32.mrf.mxu0
    %v449 = vpop.f32.mrf.mxu0
    %v450 = vadd.f32 0.0, %v449
    %v451 = vpop.f32.mrf.mxu0
    %452 = vmatprep.mubr.bf16.mxu0 0
    %453 = vmatmul.mubr.bf16.gmra.mxu0 %v135
    %v454 = vpop.f32.mrf.mxu0
    %v455 = vadd.f32 0.0, %v454
    %v456 = vpop.f32.mrf.mxu0
    %v457 = vpop.f32.mrf.mxu0
    %v458 = vadd.f32 0.0, %v457
    %v459 = vpop.f32.mrf.mxu0
    %460 = vmatprep.mubr.bf16.mxu0 0
    %461 = vmatmul.mubr.bf16.gmra.mxu0 %v136
    %v462 = vpop.f32.mrf.mxu0
    %v463 = vadd.f32 0.0, %v462
    %v464 = vpop.f32.mrf.mxu0
    %v465 = vpop.f32.mrf.mxu0
    %v466 = vadd.f32 0.0, %v465
    %v467 = vpop.f32.mrf.mxu0
    %468 = vmatprep.mubr.bf16.mxu0 0
    %469 = vmatmul.mubr.bf16.gmra.mxu0 %v137
    %v470 = vpop.f32.mrf.mxu0
    %v471 = vadd.f32 0.0, %v470
    %v472 = vpop.f32.mrf.mxu0
    %v473 = vpop.f32.mrf.mxu0
    %v474 = vadd.f32 0.0, %v473
    %v475 = vpop.f32.mrf.mxu0
    %476 = vmatprep.mubr.bf16.mxu0 0
    %477 = vmatmul.mubr.bf16.gmra.mxu0 %v138
    %v478 = vpop.f32.mrf.mxu0
    %v479 = vadd.f32 0.0, %v478
    %v480 = vpop.f32.mrf.mxu0
    %v481 = vpop.f32.mrf.mxu0
    %v482 = vadd.f32 0.0, %v481
    %v483 = vpop.f32.mrf.mxu0
    %484 = vmatprep.mubr.bf16.mxu0 0
    %485 = vmatmul.mubr.bf16.gmra.mxu0 %v139
    %v486 = vpop.f32.mrf.mxu0
    %v487 = vadd.f32 0.0, %v486
    %v488 = vpop.f32.mrf.mxu0
    %v489 = vpop.f32.mrf.mxu0
    %v490 = vadd.f32 0.0, %v489
    %v491 = vpop.f32.mrf.mxu0
    %492 = vdwg.mxu0
    %v493 = vpack.c.bf16 %v242, %v239
    %v494 = vpack.c.bf16 %v250, %v247
    %v495 = vpack.c.bf16 %v258, %v255
    %v496 = vpack.c.bf16 %v266, %v263
    %v497 = vpack.c.bf16 %v274, %v271
    %v498 = vpack.c.bf16 %v282, %v279
    %v499 = vpack.c.bf16 %v290, %v287
    %v500 = vpack.c.bf16 %v298, %v295
    %v501 = vpack.c.bf16 %v306, %v303
    %v502 = vpack.c.bf16 %v314, %v311
    %v503 = vpack.c.bf16 %v322, %v319
    %v504 = vpack.c.bf16 %v330, %v327
    %v505 = vpack.c.bf16 %v338, %v335
    %v506 = vpack.c.bf16 %v346, %v343
    %v507 = vpack.c.bf16 %v354, %v351
    %v508 = vpack.c.bf16 %v362, %v359
    %v509 = vpack.c.bf16 %v370, %v367
    %v510 = vpack.c.bf16 %v378, %v375
    %v511 = vpack.c.bf16 %v386, %v383
    %v512 = vpack.c.bf16 %v394, %v391
    %v513 = vpack.c.bf16 %v402, %v399
    %v514 = vpack.c.bf16 %v410, %v407
    %v515 = vpack.c.bf16 %v418, %v415
    %v516 = vpack.c.bf16 %v426, %v423
    %v517 = vpack.c.bf16 %v434, %v431
    %v518 = vpack.c.bf16 %v442, %v439
    %v519 = vpack.c.bf16 %v450, %v447
    %v520 = vpack.c.bf16 %v458, %v455
    %v521 = vpack.c.bf16 %v466, %v463
    %v522 = vpack.c.bf16 %v474, %v471
    %v523 = vpack.c.bf16 %v482, %v479
    %v524 = vpack.c.bf16 %v490, %v487
    %v557 = vunpack.c.l.b16 %v493
    %v558 = vunpack.c.h.b16 %v493
    %v559 = vunpack.c.l.b16 %v494
    %v560 = vunpack.c.h.b16 %v494
    %v561 = vunpack.c.l.b16 %v495
    %v562 = vunpack.c.h.b16 %v495
    %v563 = vunpack.c.l.b16 %v496
    %v564 = vunpack.c.h.b16 %v496
    %v565 = vunpack.c.l.b16 %v497
    %v566 = vunpack.c.h.b16 %v497
    %v567 = vunpack.c.l.b16 %v498
    %v568 = vunpack.c.h.b16 %v498
    %v569 = vunpack.c.l.b16 %v499
    %v570 = vunpack.c.h.b16 %v499
    %v571 = vunpack.c.l.b16 %v500
    %v572 = vunpack.c.h.b16 %v500
    %v573 = vunpack.c.l.b16 %v501
    %v574 = vunpack.c.h.b16 %v501
    %v575 = vunpack.c.l.b16 %v502
    %v576 = vunpack.c.h.b16 %v502
    %v577 = vunpack.c.l.b16 %v503
    %v578 = vunpack.c.h.b16 %v503
    %v579 = vunpack.c.l.b16 %v504
    %v580 = vunpack.c.h.b16 %v504
    %v581 = vunpack.c.l.b16 %v505
    %v582 = vunpack.c.h.b16 %v505
    %v583 = vunpack.c.l.b16 %v506
    %v584 = vunpack.c.h.b16 %v506
    %v585 = vunpack.c.l.b16 %v507
    %v586 = vunpack.c.h.b16 %v507
    %v587 = vunpack.c.l.b16 %v508
    %v588 = vunpack.c.h.b16 %v508
    %v589 = vunpack.c.l.b16 %v509
    %v590 = vunpack.c.h.b16 %v509
    %v591 = vunpack.c.l.b16 %v510
    %v592 = vunpack.c.h.b16 %v510
    %v593 = vunpack.c.l.b16 %v511
    %v594 = vunpack.c.h.b16 %v511
    %v595 = vunpack.c.l.b16 %v512
    %v596 = vunpack.c.h.b16 %v512
    %v597 = vunpack.c.l.b16 %v513
    %v598 = vunpack.c.h.b16 %v513
    %v599 = vunpack.c.l.b16 %v514
    %v600 = vunpack.c.h.b16 %v514
    %v601 = vunpack.c.l.b16 %v515
    %v602 = vunpack.c.h.b16 %v515
    %v603 = vunpack.c.l.b16 %v516
    %v604 = vunpack.c.h.b16 %v516
    %v605 = vunpack.c.l.b16 %v517
    %v606 = vunpack.c.h.b16 %v517
    %v607 = vunpack.c.l.b16 %v518
    %v608 = vunpack.c.h.b16 %v518
    %v609 = vunpack.c.l.b16 %v519
    %v610 = vunpack.c.h.b16 %v519
    %v611 = vunpack.c.l.b16 %v520
    %v612 = vunpack.c.h.b16 %v520
    %v613 = vunpack.c.l.b16 %v521
    %v614 = vunpack.c.h.b16 %v521
    %v615 = vunpack.c.l.b16 %v522
    %v616 = vunpack.c.h.b16 %v522
    %v617 = vunpack.c.l.b16 %v523
    %v618 = vunpack.c.h.b16 %v523
    %v619 = vunpack.c.l.b16 %v524
    %v620 = vunpack.c.h.b16 %v524
    %v621 = vpack.c.b16 %v557, %v557
    %v622 = vpack.c.b16 %v558, %v558
    %v623 = vpack.c.b16 %v559, %v559
    %v624 = vpack.c.b16 %v560, %v560
    %v625 = vpack.c.b16 %v561, %v561
    %v626 = vpack.c.b16 %v562, %v562
    %v627 = vpack.c.b16 %v563, %v563
    %v628 = vpack.c.b16 %v564, %v564
    %v629 = vpack.c.b16 %v565, %v565
    %v630 = vpack.c.b16 %v566, %v566
    %v631 = vpack.c.b16 %v567, %v567
    %v632 = vpack.c.b16 %v568, %v568
    %v633 = vpack.c.b16 %v569, %v569
    %v634 = vpack.c.b16 %v570, %v570
    %v635 = vpack.c.b16 %v571, %v571
    %v636 = vpack.c.b16 %v572, %v572
    %v637 = vpack.c.b16 %v573, %v573
    %v638 = vpack.c.b16 %v574, %v574
    %v639 = vpack.c.b16 %v575, %v575
    %v640 = vpack.c.b16 %v576, %v576
    %v641 = vpack.c.b16 %v577, %v577
    %v642 = vpack.c.b16 %v578, %v578
    %v643 = vpack.c.b16 %v579, %v579
    %v644 = vpack.c.b16 %v580, %v580
    %v645 = vpack.c.b16 %v581, %v581
    %v646 = vpack.c.b16 %v582, %v582
    %v647 = vpack.c.b16 %v583, %v583
    %v648 = vpack.c.b16 %v584, %v584
    %v649 = vpack.c.b16 %v585, %v585
    %v650 = vpack.c.b16 %v586, %v586
    %v651 = vpack.c.b16 %v587, %v587
    %v652 = vpack.c.b16 %v588, %v588
    %v653 = vpack.c.b16 %v589, %v589
    %v654 = vpack.c.b16 %v590, %v590
    %v655 = vpack.c.b16 %v591, %v591
    %v656 = vpack.c.b16 %v592, %v592
    %v657 = vpack.c.b16 %v593, %v593
    %v658 = vpack.c.b16 %v594, %v594
    %v659 = vpack.c.b16 %v595, %v595
    %v660 = vpack.c.b16 %v596, %v596
    %v661 = vpack.c.b16 %v597, %v597
    %v662 = vpack.c.b16 %v598, %v598
    %v663 = vpack.c.b16 %v599, %v599
    %v664 = vpack.c.b16 %v600, %v600
    %v665 = vpack.c.b16 %v601, %v601
    %v666 = vpack.c.b16 %v602, %v602
    %v667 = vpack.c.b16 %v603, %v603
    %v668 = vpack.c.b16 %v604, %v604
    %v669 = vpack.c.b16 %v605, %v605
    %v670 = vpack.c.b16 %v606, %v606
    %v671 = vpack.c.b16 %v607, %v607
    %v672 = vpack.c.b16 %v608, %v608
    %v673 = vpack.c.b16 %v609, %v609
    %v674 = vpack.c.b16 %v610, %v610
    %v675 = vpack.c.b16 %v611, %v611
    %v676 = vpack.c.b16 %v612, %v612
    %v677 = vpack.c.b16 %v613, %v613
    %v678 = vpack.c.b16 %v614, %v614
    %v679 = vpack.c.b16 %v615, %v615
    %v680 = vpack.c.b16 %v616, %v616
    %v681 = vpack.c.b16 %v617, %v617
    %v682 = vpack.c.b16 %v618, %v618
    %v683 = vpack.c.b16 %v619, %v619
    %v684 = vpack.c.b16 %v620, %v620
    %749 = vst [vmem:[#allocation7] sm:$0xf] %v621
    %750 = vst [vmem:[#allocation7 + $0x4] sm:$0xf] %v622
    %751 = vst [vmem:[#allocation7 + $0x8] sm:$0xf] %v623
    %752 = vst [vmem:[#allocation7 + $0xc] sm:$0xf] %v624
    %753 = vst [vmem:[#allocation7 + $0x10] sm:$0xf] %v625
    %754 = vst [vmem:[#allocation7 + $0x14] sm:$0xf] %v626
    %755 = vst [vmem:[#allocation7 + $0x18] sm:$0xf] %v627
    %756 = vst [vmem:[#allocation7 + $0x1c] sm:$0xf] %v628
    %757 = vst [vmem:[#allocation7 + $0x20] sm:$0xf] %v629
    %758 = vst [vmem:[#allocation7 + $0x24] sm:$0xf] %v630
    %759 = vst [vmem:[#allocation7 + $0x28] sm:$0xf] %v631
    %760 = vst [vmem:[#allocation7 + $0x2c] sm:$0xf] %v632
    %761 = vst [vmem:[#allocation7 + $0x30] sm:$0xf] %v633
    %762 = vst [vmem:[#allocation7 + $0x34] sm:$0xf] %v634
    %763 = vst [vmem:[#allocation7 + $0x38] sm:$0xf] %v635
    %764 = vst [vmem:[#allocation7 + $0x3c] sm:$0xf] %v636
    %765 = vst [vmem:[#allocation7 + $0x40] sm:$0xf] %v637
    %766 = vst [vmem:[#allocation7 + $0x44] sm:$0xf] %v638
    %767 = vst [vmem:[#allocation7 + $0x48] sm:$0xf] %v639
    %768 = vst [vmem:[#allocation7 + $0x4c] sm:$0xf] %v640
    %769 = vst [vmem:[#allocation7 + $0x50] sm:$0xf] %v641
    %770 = vst [vmem:[#allocation7 + $0x54] sm:$0xf] %v642
    %771 = vst [vmem:[#allocation7 + $0x58] sm:$0xf] %v643
    %772 = vst [vmem:[#allocation7 + $0x5c] sm:$0xf] %v644
    %773 = vst [vmem:[#allocation7 + $0x60] sm:$0xf] %v645
    %774 = vst [vmem:[#allocation7 + $0x64] sm:$0xf] %v646
    %775 = vst [vmem:[#allocation7 + $0x68] sm:$0xf] %v647
    %776 = vst [vmem:[#allocation7 + $0x6c] sm:$0xf] %v648
    %777 = vst [vmem:[#allocation7 + $0x70] sm:$0xf] %v649
    %778 = vst [vmem:[#allocation7 + $0x74] sm:$0xf] %v650
    %779 = vst [vmem:[#allocation7 + $0x78] sm:$0xf] %v651
    %780 = vst [vmem:[#allocation7 + $0x7c] sm:$0xf] %v652
    %781 = vst [vmem:[#allocation7 + $0x80] sm:$0xf] %v653
    %782 = vst [vmem:[#allocation7 + $0x84] sm:$0xf] %v654
    %783 = vst [vmem:[#allocation7 + $0x88] sm:$0xf] %v655
    %784 = vst [vmem:[#allocation7 + $0x8c] sm:$0xf] %v656
    %785 = vst [vmem:[#allocation7 + $0x90] sm:$0xf] %v657
    %786 = vst [vmem:[#allocation7 + $0x94] sm:$0xf] %v658
    %787 = vst [vmem:[#allocation7 + $0x98] sm:$0xf] %v659
    %788 = vst [vmem:[#allocation7 + $0x9c] sm:$0xf] %v660
    %789 = vst [vmem:[#allocation7 + $0xa0] sm:$0xf] %v661
    %790 = vst [vmem:[#allocation7 + $0xa4] sm:$0xf] %v662
    %791 = vst [vmem:[#allocation7 + $0xa8] sm:$0xf] %v663
    %792 = vst [vmem:[#allocation7 + $0xac] sm:$0xf] %v664
    %793 = vst [vmem:[#allocation7 + $0xb0] sm:$0xf] %v665
    %794 = vst [vmem:[#allocation7 + $0xb4] sm:$0xf] %v666
    %795 = vst [vmem:[#allocation7 + $0xb8] sm:$0xf] %v667
    %796 = vst [vmem:[#allocation7 + $0xbc] sm:$0xf] %v668
    %797 = vst [vmem:[#allocation7 + $0xc0] sm:$0xf] %v669
    %798 = vst [vmem:[#allocation7 + $0xc4] sm:$0xf] %v670
    %799 = vst [vmem:[#allocation7 + $0xc8] sm:$0xf] %v671
    %800 = vst [vmem:[#allocation7 + $0xcc] sm:$0xf] %v672
    %801 = vst [vmem:[#allocation7 + $0xd0] sm:$0xf] %v673
    %802 = vst [vmem:[#allocation7 + $0xd4] sm:$0xf] %v674
    %803 = vst [vmem:[#allocation7 + $0xd8] sm:$0xf] %v675
    %804 = vst [vmem:[#allocation7 + $0xdc] sm:$0xf] %v676
    %805 = vst [vmem:[#allocation7 + $0xe0] sm:$0xf] %v677
    %806 = vst [vmem:[#allocation7 + $0xe4] sm:$0xf] %v678
    %807 = vst [vmem:[#allocation7 + $0xe8] sm:$0xf] %v679
    %808 = vst [vmem:[#allocation7 + $0xec] sm:$0xf] %v680
    %809 = vst [vmem:[#allocation7 + $0xf0] sm:$0xf] %v681
    %810 = vst [vmem:[#allocation7 + $0xf4] sm:$0xf] %v682
    %811 = vst [vmem:[#allocation7 + $0xf8] sm:$0xf] %v683
    %812 = vst [vmem:[#allocation7 + $0xfc] sm:$0xf] %v684
    %813 = vst [vmem:[#allocation8] sm:$0xff] 0.0
    %v814 = vadd.f32 %v239, %v242
    %v815 = vadd.f32 %v814, %v247
    %v816 = vadd.f32 %v815, %v250
    %v817 = vadd.f32 %v816, %v255
    %v818 = vadd.f32 %v817, %v258
    %v819 = vadd.f32 %v818, %v263
    %v820 = vadd.f32 %v819, %v266
    %v821 = vadd.f32 %v820, %v271
    %v822 = vadd.f32 %v821, %v274
    %v823 = vadd.f32 %v822, %v279
    %v824 = vadd.f32 %v823, %v282
    %v825 = vadd.f32 %v824, %v287
    %v826 = vadd.f32 %v825, %v290
    %v827 = vadd.f32 %v826, %v295
    %v828 = vadd.f32 %v827, %v298
    %v829 = vadd.f32 %v828, %v303
    %v830 = vadd.f32 %v829, %v306
    %v831 = vadd.f32 %v830, %v311
    %v832 = vadd.f32 %v831, %v314
    %v833 = vadd.f32 %v832, %v319
    %v834 = vadd.f32 %v833, %v322
    %v835 = vadd.f32 %v834, %v327
    %v836 = vadd.f32 %v835, %v330
    %v837 = vadd.f32 %v836, %v335
    %v838 = vadd.f32 %v837, %v338
    %v839 = vadd.f32 %v838, %v343
    %v840 = vadd.f32 %v839, %v346
    %v841 = vadd.f32 %v840, %v351
    %v842 = vadd.f32 %v841, %v354
    %v843 = vadd.f32 %v842, %v359
    %v844 = vadd.f32 %v843, %v362
    %v845 = vadd.f32 %v844, %v367
    %v846 = vadd.f32 %v845, %v370
    %v847 = vadd.f32 %v846, %v375
    %v848 = vadd.f32 %v847, %v378
    %v849 = vadd.f32 %v848, %v383
    %v850 = vadd.f32 %v849, %v386
    %v851 = vadd.f32 %v850, %v391
    %v852 = vadd.f32 %v851, %v394
    %v853 = vadd.f32 %v852, %v399
    %v854 = vadd.f32 %v853, %v402
    %v855 = vadd.f32 %v854, %v407
    %v856 = vadd.f32 %v855, %v410
    %v857 = vadd.f32 %v856, %v415
    %v858 = vadd.f32 %v857, %v418
    %v859 = vadd.f32 %v858, %v423
    %v860 = vadd.f32 %v859, %v426
    %v861 = vadd.f32 %v860, %v431
    %v862 = vadd.f32 %v861, %v434
    %v863 = vadd.f32 %v862, %v439
    %v864 = vadd.f32 %v863, %v442
    %v865 = vadd.f32 %v864, %v447
    %v866 = vadd.f32 %v865, %v450
    %v867 = vadd.f32 %v866, %v455
    %v868 = vadd.f32 %v867, %v458
    %v869 = vadd.f32 %v868, %v463
    %v870 = vadd.f32 %v869, %v466
    %v871 = vadd.f32 %v870, %v471
    %v872 = vadd.f32 %v871, %v474
    %v873 = vadd.f32 %v872, %v479
    %v874 = vadd.f32 %v873, %v482
    %v875 = vadd.f32 %v874, %v487
    %v876 = vadd.f32 %v875, %v490
    %v877 = vrot.slane %v876, 4
    %v878 = vadd.f32 %v876, %v877
    %v879 = vrot.slane %v878, 2
    %v880 = vadd.f32 %v878, %v879
    %v881 = vrot.slane %v880, 1
    %v882 = vadd.f32 %v880, %v881
    %883 = vst [vmem:[#allocation8] sm:$0x1] %v882
    %v884 = vmul.f32 %v239, %v239
    %v885 = vmul.f32 %v242, %v242
    %v886 = vmul.f32 %v247, %v247
    %v887 = vmul.f32 %v250, %v250
    %v888 = vmul.f32 %v255, %v255
    %v889 = vmul.f32 %v258, %v258
    %v890 = vmul.f32 %v263, %v263
    %v891 = vmul.f32 %v266, %v266
    %v892 = vmul.f32 %v271, %v271
    %v893 = vmul.f32 %v274, %v274
    %v894 = vmul.f32 %v279, %v279
    %v895 = vmul.f32 %v282, %v282
    %v896 = vmul.f32 %v287, %v287
    %v897 = vmul.f32 %v290, %v290
    %v898 = vmul.f32 %v295, %v295
    %v899 = vmul.f32 %v298, %v298
    %v900 = vmul.f32 %v303, %v303
    %v901 = vmul.f32 %v306, %v306
    %v902 = vmul.f32 %v311, %v311
    %v903 = vmul.f32 %v314, %v314
    %v904 = vmul.f32 %v319, %v319
    %v905 = vmul.f32 %v322, %v322
    %v906 = vmul.f32 %v327, %v327
    %v907 = vmul.f32 %v330, %v330
    %v908 = vmul.f32 %v335, %v335
    %v909 = vmul.f32 %v338, %v338
    %v910 = vmul.f32 %v343, %v343
    %v911 = vmul.f32 %v346, %v346
    %v912 = vmul.f32 %v351, %v351
    %v913 = vmul.f32 %v354, %v354
    %v914 = vmul.f32 %v359, %v359
    %v915 = vmul.f32 %v362, %v362
    %v916 = vmul.f32 %v367, %v367
    %v917 = vmul.f32 %v370, %v370
    %v918 = vmul.f32 %v375, %v375
    %v919 = vmul.f32 %v378, %v378
    %v920 = vmul.f32 %v383, %v383
    %v921 = vmul.f32 %v386, %v386
    %v922 = vmul.f32 %v391, %v391
    %v923 = vmul.f32 %v394, %v394
    %v924 = vmul.f32 %v399, %v399
    %v925 = vmul.f32 %v402, %v402
    %v926 = vmul.f32 %v407, %v407
    %v927 = vmul.f32 %v410, %v410
    %v928 = vmul.f32 %v415, %v415
    %v929 = vmul.f32 %v418, %v418
    %v930 = vmul.f32 %v423, %v423
    %v931 = vmul.f32 %v426, %v426
    %v932 = vmul.f32 %v431, %v431
    %v933 = vmul.f32 %v434, %v434
    %v934 = vmul.f32 %v439, %v439
    %v935 = vmul.f32 %v442, %v442
    %v936 = vmul.f32 %v447, %v447
    %v937 = vmul.f32 %v450, %v450
    %v938 = vmul.f32 %v455, %v455
    %v939 = vmul.f32 %v458, %v458
    %v940 = vmul.f32 %v463, %v463
    %v941 = vmul.f32 %v466, %v466
    %v942 = vmul.f32 %v471, %v471
    %v943 = vmul.f32 %v474, %v474
    %v944 = vmul.f32 %v479, %v479
    %v945 = vmul.f32 %v482, %v482
    %v946 = vmul.f32 %v487, %v487
    %v947 = vmul.f32 %v490, %v490
    %v948 = vadd.f32 %v884, %v885
    %v949 = vadd.f32 %v948, %v886
    %v950 = vadd.f32 %v949, %v887
    %v951 = vadd.f32 %v950, %v888
    %v952 = vadd.f32 %v951, %v889
    %v953 = vadd.f32 %v952, %v890
    %v954 = vadd.f32 %v953, %v891
    %v955 = vadd.f32 %v954, %v892
    %v956 = vadd.f32 %v955, %v893
    %v957 = vadd.f32 %v956, %v894
    %v958 = vadd.f32 %v957, %v895
    %v959 = vadd.f32 %v958, %v896
    %v960 = vadd.f32 %v959, %v897
    %v961 = vadd.f32 %v960, %v898
    %v962 = vadd.f32 %v961, %v899
    %v963 = vadd.f32 %v962, %v900
    %v964 = vadd.f32 %v963, %v901
    %v965 = vadd.f32 %v964, %v902
    %v966 = vadd.f32 %v965, %v903
    %v967 = vadd.f32 %v966, %v904
    %v968 = vadd.f32 %v967, %v905
    %v969 = vadd.f32 %v968, %v906
    %v970 = vadd.f32 %v969, %v907
    %v971 = vadd.f32 %v970, %v908
    %v972 = vadd.f32 %v971, %v909
    %v973 = vadd.f32 %v972, %v910
    %v974 = vadd.f32 %v973, %v911
    %v975 = vadd.f32 %v974, %v912
    %v976 = vadd.f32 %v975, %v913
    %v977 = vadd.f32 %v976, %v914
    %v978 = vadd.f32 %v977, %v915
    %v979 = vadd.f32 %v978, %v916
    %v980 = vadd.f32 %v979, %v917
    %v981 = vadd.f32 %v980, %v918
    %v982 = vadd.f32 %v981, %v919
    %v983 = vadd.f32 %v982, %v920
    %v984 = vadd.f32 %v983, %v921
    %v985 = vadd.f32 %v984, %v922
    %v986 = vadd.f32 %v985, %v923
    %v987 = vadd.f32 %v986, %v924
    %v988 = vadd.f32 %v987, %v925
    %v989 = vadd.f32 %v988, %v926
    %v990 = vadd.f32 %v989, %v927
    %v991 = vadd.f32 %v990, %v928
    %v992 = vadd.f32 %v991, %v929
    %v993 = vadd.f32 %v992, %v930
    %v994 = vadd.f32 %v993, %v931
    %v995 = vadd.f32 %v994, %v932
    %v996 = vadd.f32 %v995, %v933
    %v997 = vadd.f32 %v996, %v934
    %v998 = vadd.f32 %v997, %v935
    %v999 = vadd.f32 %v998, %v936
    %v1000 = vadd.f32 %v999, %v937
    %v1001 = vadd.f32 %v1000, %v938
    %v1002 = vadd.f32 %v1001, %v939
    %v1003 = vadd.f32 %v1002, %v940
    %v1004 = vadd.f32 %v1003, %v941
    %v1005 = vadd.f32 %v1004, %v942
    %v1006 = vadd.f32 %v1005, %v943
    %v1007 = vadd.f32 %v1006, %v944
    %v1008 = vadd.f32 %v1007, %v945
    %v1009 = vadd.f32 %v1008, %v946
    %v1010 = vadd.f32 %v1009, %v947
    %v1011 = vrot.slane %v1010, 4
    %v1012 = vadd.f32 %v1010, %v1011
    %v1013 = vrot.slane %v1012, 2
    %v1014 = vadd.f32 %v1012, %v1013
    %v1015 = vrot.slane %v1014, 1
    %v1016 = vadd.f32 %v1014, %v1015
    %1017 = vst [vmem:[#allocation8 + $0x1] sm:$0x1] %v1016
    // Predicated region
    $region18: #{tpu_custom_call.1} parent=1 // pred_check
      _
    $region19: #{tpu_custom_call.1} parent=1 // pred_check_branch
      %1019 = sbr.rel (0) target = $region21
    $region20: #{tpu_custom_call.1} parent=1 // pred_region
      %s1021 = ssub.s32 4096, 4096
      %1022 = vsyncadd [#allocation4], %s1021
      %s1023 = sshll.u32 [#allocation7], 4
      %s1024 = int_to_ptr.vmem [resolvable:$true] %s1023
      %1029 = dma.vmem_to_hbm [thread:$0]  %s1024, 4096, %s2, [#allocation4], 64, 64, 4
    $region21: #{tpu_custom_call.1} parent=1 // pred_fallthru
      _
    // Predicated region
    $region22: #{tpu_custom_call.1} parent=1 // pred_check
      _
    $region23: #{tpu_custom_call.1} parent=1 // pred_check_branch
      %1031 = sbr.rel (0) target = $region25
    $region24: #{tpu_custom_call.1} parent=1 // pred_region
      %s1033 = ssub.s32 128, 128
      %1034 = vsyncadd [#allocation9], %s1033
      %s1036 = sshll.u32 [#allocation8], 4
      %s1037 = int_to_ptr.vmem [resolvable:$true] %s1036
      %1039 = dma.vmem_to_hbm [thread:$0]  %s1037, 128, %s3, [#allocation9]
    $region25: #{tpu_custom_call.1} parent=1 // pred_fallthru
      _
    // Predicated region
    $region26: #{tpu_custom_call.1} parent=1 // pred_check
      _
    $region27: #{tpu_custom_call.1} parent=1 // pred_check_branch
      %1041 = sbr.rel (0) target = $region29
    $region28: #{tpu_custom_call.1} parent=1 // pred_region
      %1042 = dma.done [#allocation4], 4096
    $region29: #{tpu_custom_call.1} parent=1 // pred_fallthru
      _
    // Predicated region
    $region30: #{tpu_custom_call.1} parent=1 // pred_check
      _
    $region31: #{tpu_custom_call.1} parent=1 // pred_check_branch
      %1044 = sbr.rel (0) target = $region33
    $region32: #{tpu_custom_call.1} parent=1 // pred_region
      %1045 = dma.done [#allocation9], 128
    $region33: #{tpu_custom_call.1} parent=1 // pred_fallthru
      _
    %1046 = vsyncpa [#allocation3], 1
    %1047 = vsyncpa [#allocation6], 1
    %1048 = vsyncpa [#allocation4], 1
    %1049 = vsyncpa [#allocation9], 1

</llo_original>
